<compile_context>
chip_gen: v7x
topology: tpu7x:2x2x1
jax: 0.10.0
libtpu: 0.0.40
codegen_flags: <defaults>
</compile_context>

<pallas_src>
import jax
import jax.numpy as jnp
from jax.experimental import pallas as pl
from jax.experimental.pallas import tpu as pltpu

EPS = 1e-5


def _patch_forward_kernel(x_ref, w_ref, b_ref, o_ref, xn_ref):
    """Compute one (tile_m, tile_n) output block.

    x_ref : (tile_m, C)      input rows (resident across the n axis)
    w_ref : (C, tile_n)      gamma-folded, transposed linear weight (mm dtype)
    b_ref : (1, tile_n)      beta-folded bias, fp32
    o_ref : (tile_m, tile_n) output block
    xn_ref: (tile_m, C)      VMEM scratch holding LayerNorm(x) in mm dtype
    """
    # LayerNorm once per row tile (first n step), reused for every column tile.
    @pl.when(pl.program_id(1) == 0)
    def _():
        xv = x_ref[...].astype(jnp.float32)
        mean = jnp.mean(xv, axis=-1, keepdims=True)
        centered = xv - mean
        var = jnp.mean(centered * centered, axis=-1, keepdims=True)
        inv_std = jax.lax.rsqrt(var + EPS)
        xn_ref[...] = (centered * inv_std).astype(xn_ref.dtype)

    y = jnp.dot(xn_ref[...], w_ref[...], preferred_element_type=jnp.float32)
    o_ref[...] = (y + b_ref[...]).astype(o_ref.dtype)


def _round_up(v, m):
    return (v + m - 1) // m * m


def _vmem_budget():
    """Generation-aware (tile_budget_bytes, vmem_limit_cap_bytes)."""
    cap = None
    try:
        cap = getattr(pltpu.get_tpu_info(), "vmem_capacity_bytes", None)
    except Exception:
        cap = None
    if cap is None:
        cap = 64 << 20                       # assume the smallest (v7x per-TC) VMEM
    if cap >= (96 << 20):                    # v5e / v6e: 128 MiB physical VMEM
        return 92 << 20, 100 << 20
    return 40 << 20, 54 << 20                # v7x: 64 MiB/TC -> leave Mosaic headroom


def patch_forward_3d(x, gamma, beta, weight, *,
                     tile_m=None, tile_n=None, matmul_dtype=None):
    """Fused LayerNorm(dim) -> Linear(dim, 2*dim, bias=False).

    x: (..., C); gamma/beta: (C,); weight: (2C, C) torch layout (out, in).
    matmul_dtype: dtype fed to the MXU.  Defaults to bf16 for fp32 weights
    (LN stats and accumulation stay fp32); pass jnp.float32 for exact math.
    """
    C = x.shape[-1]
    C2 = 2 * C
    orig_shape = x.shape
    xm = x.reshape(-1, C)
    M = xm.shape[0]

    if matmul_dtype is not None:
        mm_dtype = jnp.dtype(matmul_dtype)
    elif jnp.dtype(weight.dtype) == jnp.float32:
        mm_dtype = jnp.dtype(jnp.bfloat16)   # peak MXU path, half the weight bytes
    else:
        mm_dtype = jnp.dtype(weight.dtype)

    x_bytes = jnp.dtype(x.dtype).itemsize
    w_bytes = mm_dtype.itemsize
    out_bytes = x_bytes

    budget, vmem_cap = _vmem_budget()

    Cp = _round_up(C, 128)                   # lane-padded feature dim
    Cs = _round_up(C, 16)                    # sublane-padded K dim of the weight
    C2p = _round_up(C2, 128)

    # ---- output-column tiling: keep the weight resident whenever it fits ----
    full_w_bytes = Cs * C2p * w_bytes
    if tile_n is None:
        if full_w_bytes <= budget // 3:
            tile_n = C2                      # weight resident in VMEM
        else:                                # stream (C, tile_n) column tiles
            tile_n = max(128, min(
                C2p, ((budget // 4) // (2 * Cs * w_bytes)) // 128 * 128))
    if tile_n >= C2:
        tile_n = C2
    else:
        tile_n = max(128, (int(tile_n) // 128) * 128)
    weight_resident = tile_n == C2
    grid_n = pl.cdiv(C2, tile_n)
    tnp = _round_up(tile_n, 128)

    # Single-buffer the resident weight once it is large enough to matter
    # (its index_map is constant, so it is only DMA'd once anyway).
    use_single_buffer = weight_resident and full_w_bytes > (2 << 20)
    w_buffers = 1 if use_single_buffer else 2

    # ---- row tiling: largest multiple-of-8 tile fitting the VMEM budget -----
    fixed = w_buffers * Cs * tnp * w_bytes + 2 * 8 * tnp * 4       # weight + bias
    per_row = (2 * Cp * x_bytes              # double-buffered input block
               + 2 * tnp * out_bytes         # double-buffered output block
               + Cp * w_bytes                # LayerNorm scratch (mm dtype)
               + 4 * (2 * Cp + tnp))         # fp32 intermediates margin
    if tile_m is None:
        avail = max(budget - fixed, 8 * per_row)
        tile_m = int(min(1024, max(8, (avail // per_row) // 8 * 8)))
    tile_m = max(8, (int(tile_m) // 8) * 8)
    # Keep >= ~8 grid steps once the problem is big enough (pipelining and
    # v7x megacore sharding), without shrinking tiles below ~128 rows.
    min_steps = min(8, max(1, pl.cdiv(M, 128)))
    tile_m = min(tile_m, max(8, _round_up(pl.cdiv(M, min_steps), 8)))
    grid_m = pl.cdiv(M, tile_m)              # partial last block handled by Pallas

    est_vmem = fixed + tile_m * per_row
    vmem_limit = int(min(vmem_cap, max(est_vmem + (2 << 20), 16 << 20)))

    # ---- one-time wrapper-side fold / transpose / cast ----------------------
    w32 = weight.astype(jnp.float32).T                        # (C, 2C)
    w_eff = (gamma.astype(jnp.float32)[:, None] * w32).astype(mm_dtype)
    bias_eff = (beta.astype(jnp.float32) @ w32).reshape(1, C2)  # fp32 (1, 2C)

    weight_reads = 1 if weight_resident else grid_m
    cost = pl.CostEstimate(
        flops=2 * M * C * C2 + 8 * M * C,
        transcendentals=M,                                     # one rsqrt per row
        bytes_accessed=(M * C * x_bytes
                        + weight_reads * C * C2 * w_bytes
                        + M * C2 * out_bytes + C2 * 4),
    )

    if use_single_buffer:
        w_spec = pl.BlockSpec((C, tile_n), lambda i, j: (0, 0),
                              pipeline_mode=pl.Buffered(1))
    elif weight_resident:
        w_spec = pl.BlockSpec((C, tile_n), lambda i, j: (0, 0))
    else:
        w_spec = pl.BlockSpec((C, tile_n), lambda i, j: (0, j))

    out = pl.pallas_call(
        _patch_forward_kernel,
        out_shape=jax.ShapeDtypeStruct((M, C2), x.dtype),
        grid_spec=pltpu.PrefetchScalarGridSpec(
            num_scalar_prefetch=0,
            grid=(grid_m, grid_n),
            in_specs=[
                pl.BlockSpec((tile_m, C), lambda i, j: (i, 0)),  # rows (resident over n)
                w_spec,                                          # folded weight
                pl.BlockSpec((1, tile_n), lambda i, j: (0, j)),  # folded bias
            ],
            out_specs=pl.BlockSpec((tile_m, tile_n), lambda i, j: (i, j)),
            scratch_shapes=[pltpu.VMEM((tile_m, C), mm_dtype)],  # LN(x) cache
        ),
        compiler_params=pltpu.CompilerParams(
            dimension_semantics=("parallel", "arbitrary"),
            vmem_limit_bytes=vmem_limit),
        cost_estimate=cost,
    )(xm, w_eff, bias_eff)

    return out.reshape(*orig_shape[:-1], C2)


def _reference(x, gamma, beta, weight):
    x32 = x.astype(jnp.float32)
    mean = jnp.mean(x32, axis=-1, keepdims=True)
    var = jnp.mean((x32 - mean) ** 2, axis=-1, keepdims=True)
    xn = (x32 - mean) / jnp.sqrt(var + EPS)
    xn = xn * gamma.astype(jnp.float32) + beta.astype(jnp.float32)
    return (xn @ weight.astype(jnp.float32).T).astype(x.dtype)


if __name__ == "__main__":
    key = jax.random.PRNGKey(0)
    k_x, k_w, k_g, k_b, k_x2, k_x3, k_w3 = jax.random.split(key, 7)

    # --- test 1: default path (bf16 MXU), M = 2*4*4*4 = 128 rows ------------
    B, D, H, W, dim = 2, 4, 4, 4, 32
    x = jax.random.normal(k_x, (B, D, H, W, dim), dtype=jnp.float32)
    gamma = 1.0 + 0.1 * jax.random.normal(k_g, (dim,), dtype=jnp.float32)
    beta = 0.05 * jax.random.normal(k_b, (dim,), dtype=jnp.float32)
    weight = jax.random.normal(k_w, (2 * dim, dim), dtype=jnp.float32) * 0.05

    out = jax.block_until_ready(patch_forward_3d(x, gamma, beta, weight))
    ref = _reference(x, gamma, beta, weight)
    assert out.shape == (B, D, H, W, 2 * dim)
    assert jnp.allclose(out, ref, atol=2e-2, rtol=2e-2)   # bf16 MXU tolerance

    # --- test 2: ragged M (partial last block, no wrapper pad), fp32 MXU ----
    x2 = jax.random.normal(k_x2, (1, 3, 5, 7, dim), dtype=jnp.float32)
    out2 = jax.block_until_ready(
        patch_forward_3d(x2, gamma, beta, weight, matmul_dtype=jnp.float32))
    ref2 = _reference(x2, gamma, beta, weight)
    assert out2.shape == (1, 3, 5, 7, 2 * dim)
    assert jnp.allclose(out2, ref2, atol=1e-4, rtol=1e-4)

    # --- test 3: forced output-column tiling (weight-streaming path) --------
    dim3 = 128
    x3 = jax.random.normal(k_x3, (1, 2, 4, 8, dim3), dtype=jnp.float32)
    w3 = jax.random.normal(k_w3, (2 * dim3, dim3), dtype=jnp.float32) * 0.03
    g3 = jnp.ones((dim3,), jnp.float32)
    b3 = jnp.zeros((dim3,), jnp.float32)
    out3 = jax.block_until_ready(
        patch_forward_3d(x3, g3, b3, w3, tile_n=128, matmul_dtype=jnp.float32))
    ref3 = _reference(x3, g3, b3, w3)
    assert out3.shape == (1, 2, 4, 8, 2 * dim3)
    assert jnp.allclose(out3, ref3, atol=1e-4, rtol=1e-4)

    print("KERNEL_OK")
</pallas_src>

<mosaic_0001>
module attributes {stable_mosaic.version = 11 : i64} {
  func.func @_patch_forward_kernel(%arg0: i32, %arg1: i32, %arg2: memref<128x32xf32, #tpu.memory_space<vmem>>, %arg3: memref<32x64xbf16, #tpu.memory_space<vmem>>, %arg4: memref<1x64xf32, #tpu.memory_space<vmem>>, %arg5: memref<128x64xf32, #tpu.memory_space<vmem>>, %arg6: memref<128x32xbf16, #tpu.memory_space<vmem>>) attributes {dimension_semantics = [#tpu.dimension_semantics<parallel>, #tpu.dimension_semantics<arbitrary>], iteration_bounds = array<i64: 1, 1>, scalar_prefetch = 0 : i64, scratch_operands = 1 : i64, tpu.core_type = #tpu.core_type<tc>, window_params = [{transform_indices = @transform_0, window_bounds = array<i64: 128, 32>}, {pipeline_mode = #tpu.pipeline_mode<synchronous>, transform_indices = @transform_1, window_bounds = array<i64: 32, 64>}, {transform_indices = @transform_2, window_bounds = array<i64: 1, 64>}, {transform_indices = @transform_3, window_bounds = array<i64: 128, 64>}]} {
    %c0_i32 = arith.constant 0 : i32
    %0 = arith.cmpi eq, %arg1, %c0_i32 : i32
    %1 = arith.extui %0 : i1 to i32
    %c0_i32_0 = arith.constant 0 : i32
    %2 = arith.cmpi ne, %1, %c0_i32_0 : i32
    scf.if %2 {
      %c0_8 = arith.constant 0 : index
      %c0_9 = arith.constant 0 : index
      %10 = vector.load %arg2[%c0_8, %c0_9] : memref<128x32xf32, #tpu.memory_space<vmem>>, vector<128x32xf32>
      %cst_10 = arith.constant dense<0.000000e+00> : vector<128xf32>
      %11 = vector.multi_reduction <add>, %10, %cst_10 [1] : vector<128x32xf32> to vector<128xf32>
      %12 = vector.shape_cast %11 : vector<128xf32> to vector<128x1xf32>
      %cst_11 = arith.constant 3.200000e+01 : f32
      %13 = vector.broadcast %cst_11 : f32 to vector<128x1xf32>
      %14 = arith.divf %12, %13 : vector<128x1xf32>
      %15 = vector.broadcast %14 : vector<128x1xf32> to vector<128x32xf32>
      %16 = arith.subf %10, %15 : vector<128x32xf32>
      %17 = arith.mulf %16, %16 : vector<128x32xf32>
      %cst_12 = arith.constant dense<0.000000e+00> : vector<128xf32>
      %18 = vector.multi_reduction <add>, %17, %cst_12 [1] : vector<128x32xf32> to vector<128xf32>
      %19 = vector.shape_cast %18 : vector<128xf32> to vector<128x1xf32>
      %cst_13 = arith.constant 3.200000e+01 : f32
      %20 = vector.broadcast %cst_13 : f32 to vector<128x1xf32>
      %21 = arith.divf %19, %20 : vector<128x1xf32>
      %cst_14 = arith.constant 9.99999974E-6 : f32
      %22 = vector.broadcast %cst_14 : f32 to vector<128x1xf32>
      %23 = arith.addf %21, %22 : vector<128x1xf32>
      %24 = math.rsqrt %23 : vector<128x1xf32>
      %25 = vector.broadcast %24 : vector<128x1xf32> to vector<128x32xf32>
      %26 = arith.mulf %16, %25 : vector<128x32xf32>
      %27 = arith.truncf %26 : vector<128x32xf32> to vector<128x32xbf16>
      %c0_15 = arith.constant 0 : index
      %c0_16 = arith.constant 0 : index
      %28 = vector.load %arg6[%c0_15, %c0_16] : memref<128x32xbf16, #tpu.memory_space<vmem>>, vector<128x32xbf16>
      tpu.vector_store %arg6[%c0_15, %c0_16], %27 {strides = array<i32>} : memref<128x32xbf16, #tpu.memory_space<vmem>>, vector<128x32xbf16>,
    } else {
    }
    %c0 = arith.constant 0 : index
    %c0_1 = arith.constant 0 : index
    %3 = vector.load %arg6[%c0, %c0_1] : memref<128x32xbf16, #tpu.memory_space<vmem>>, vector<128x32xbf16>
    %c0_2 = arith.constant 0 : index
    %c0_3 = arith.constant 0 : index
    %4 = vector.load %arg3[%c0_2, %c0_3] : memref<32x64xbf16, #tpu.memory_space<vmem>>, vector<32x64xbf16>
    %cst = arith.constant dense<0.000000e+00> : vector<128x64xf32>
    %5 = tpu.matmul %3, %4, %cst {dimension_numbers = #tpu.dot_dimension_numbers<[1], [0], [0], [1], [0, 0, 1, 1], [], []>} : vector<128x32xbf16>, vector<32x64xbf16>, vector<128x64xf32> -> vector<128x64xf32>
    %c0_4 = arith.constant 0 : index
    %c0_5 = arith.constant 0 : index
    %6 = vector.load %arg4[%c0_4, %c0_5] : memref<1x64xf32, #tpu.memory_space<vmem>>, vector<1x64xf32>
    %7 = vector.broadcast %6 : vector<1x64xf32> to vector<128x64xf32>
    %8 = arith.addf %5, %7 : vector<128x64xf32>
    %c0_6 = arith.constant 0 : index
    %c0_7 = arith.constant 0 : index
    %9 = vector.load %arg5[%c0_6, %c0_7] : memref<128x64xf32, #tpu.memory_space<vmem>>, vector<128x64xf32>
    tpu.vector_store %arg5[%c0_6, %c0_7], %8 {strides = array<i32>} : memref<128x64xf32, #tpu.memory_space<vmem>>, vector<128x64xf32>,
    return
  }
  func.func @transform_0(%arg0: i32, %arg1: i32) -> (i32, i32) {
    %c0_i32 = arith.constant 0 : i32
    %c0_i32_0 = arith.constant 0 : i32
    return %arg0, %c0_i32 : i32, i32
  }
  func.func @transform_1(%arg0: i32, %arg1: i32) -> (i32, i32) {
    %c0_i32 = arith.constant 0 : i32
    %c0_i32_0 = arith.constant 0 : i32
    %c0_i32_1 = arith.constant 0 : i32
    return %c0_i32, %c0_i32_0 : i32, i32
  }
  func.func @transform_2(%arg0: i32, %arg1: i32) -> (i32, i32) {
    %c0_i32 = arith.constant 0 : i32
    %c0_i32_0 = arith.constant 0 : i32
    return %c0_i32, %arg1 : i32, i32
  }
  func.func @transform_3(%arg0: i32, %arg1: i32) -> (i32, i32) {
    %c0_i32 = arith.constant 0 : i32
    return %arg0, %arg1 : i32, i32
  }
}

</mosaic_0001>

<llo_original>
// kernel: tpu_custom_call.1
$region0: #{tpu_custom_call.1}
  #allocation0 [shape = 'u32[]', space=smem, size = 0x4, offset = 0x4, fixed_abs, tag = 'smem constant byte address 0x4 - core index']
  #allocation1 [shape = 'u32[144,128]{1,0:T(1,128)}', space=vmem, size = 0x12000, scoped, tag = 'internal scratch']
  #allocation2 [shape = 'bf16[128,32]{1,0:T(16,128)(2,1)}', space=vmem, size = 0x8000, scoped, tag = 'scratch operand']
  %s0 = inlined_call_operand.vmem [shape: f32[128,32], index: 0, kind: input, shape index: {}]
  %s1 = inlined_call_operand.vmem [shape: bf16[32,64], index: 1, kind: input, shape index: {}]
  %s2 = inlined_call_operand.vmem [shape: f32[1,64], index: 2, kind: input, shape index: {}]
  %s3 = inlined_call_operand.vmem [shape: f32[128,64], index: 3, kind: output, shape index: {}]
  %s4 = sld [smem:[#allocation0]]
  $region26: #{tpu_custom_call.1} parent=0
    _
  %s6 = ssub.s32 1, %s4
  %s7 = scalar_select 0, %s6, %s4
  // Predicated region
  $region2: #{tpu_custom_call.1} parent=0 // pred_check
    _
  $region3: #{tpu_custom_call.1} parent=0 // pred_check_branch
    %9 = sbr.rel (0) target = $region5
  $region4: #{tpu_custom_call.1} parent=0 // pred_region
    _
  $region5: #{tpu_custom_call.1} parent=0 // pred_fallthru
    _
  // Predicated region
  $region6: #{tpu_custom_call.1} parent=0 // pred_check
    _
  $region7: #{tpu_custom_call.1} parent=0 // pred_check_branch
    %11 = sbr.rel (0) target = $region9
  $region8: #{tpu_custom_call.1} parent=0 // pred_region
    _
  $region9: #{tpu_custom_call.1} parent=0 // pred_fallthru
    _
  // Predicated region
  $region10: #{tpu_custom_call.1} parent=0 // pred_check
    _
  $region11: #{tpu_custom_call.1} parent=0 // pred_check_branch
    %13 = sbr.rel (0) target = $region13
  $region12: #{tpu_custom_call.1} parent=0 // pred_region
    _
  $region13: #{tpu_custom_call.1} parent=0 // pred_fallthru
    _
  %p15 = scmp.eq.s32.totalorder 0, 0
  // Predicated region
  $region14: #{tpu_custom_call.1} parent=0 // pred_check
    %p16 = pneg %p15
  $region15: #{tpu_custom_call.1} parent=0 // pred_check_branch
    %18 = sbr.rel (%p16) target = $region17
  $region16: #{tpu_custom_call.1} parent=0 // pred_region
    %v19 = vld [vmem:[%s0] sm:$0xff]
    %v20 = vld [vmem:[%s0 + $0x8] sm:$0xff]
    %v21 = vld [vmem:[%s0 + $0x10] sm:$0xff]
    %v22 = vld [vmem:[%s0 + $0x18] sm:$0xff]
    %v23 = vld [vmem:[%s0 + $0x20] sm:$0xff]
    %v24 = vld [vmem:[%s0 + $0x28] sm:$0xff]
    %v25 = vld [vmem:[%s0 + $0x30] sm:$0xff]
    %v26 = vld [vmem:[%s0 + $0x38] sm:$0xff]
    %v27 = vld [vmem:[%s0 + $0x40] sm:$0xff]
    %v28 = vld [vmem:[%s0 + $0x48] sm:$0xff]
    %v29 = vld [vmem:[%s0 + $0x50] sm:$0xff]
    %v30 = vld [vmem:[%s0 + $0x58] sm:$0xff]
    %v31 = vld [vmem:[%s0 + $0x60] sm:$0xff]
    %v32 = vld [vmem:[%s0 + $0x68] sm:$0xff]
    %v33 = vld [vmem:[%s0 + $0x70] sm:$0xff]
    %v34 = vld [vmem:[%s0 + $0x78] sm:$0xff]
    %vm35 = vcmask 261120
    %v36 = vsel %vm35, %v19, 0.0
    %37 = vadd.xlane.f32.xlu0 %v36
    %v38 = vpop.xlane.xlu0 %37
    %v39 = vsel %vm35, %v20, 0.0
    %40 = vadd.xlane.f32.xlu0 %v39
    %v41 = vpop.xlane.xlu0 %40
    %v42 = vsel %vm35, %v21, 0.0
    %43 = vadd.xlane.f32.xlu0 %v42
    %v44 = vpop.xlane.xlu0 %43
    %v45 = vsel %vm35, %v22, 0.0
    %46 = vadd.xlane.f32.xlu0 %v45
    %v47 = vpop.xlane.xlu0 %46
    %v48 = vsel %vm35, %v23, 0.0
    %49 = vadd.xlane.f32.xlu0 %v48
    %v50 = vpop.xlane.xlu0 %49
    %v51 = vsel %vm35, %v24, 0.0
    %52 = vadd.xlane.f32.xlu0 %v51
    %v53 = vpop.xlane.xlu0 %52
    %v54 = vsel %vm35, %v25, 0.0
    %55 = vadd.xlane.f32.xlu0 %v54
    %v56 = vpop.xlane.xlu0 %55
    %v57 = vsel %vm35, %v26, 0.0
    %58 = vadd.xlane.f32.xlu0 %v57
    %v59 = vpop.xlane.xlu0 %58
    %v60 = vsel %vm35, %v27, 0.0
    %61 = vadd.xlane.f32.xlu0 %v60
    %v62 = vpop.xlane.xlu0 %61
    %v63 = vsel %vm35, %v28, 0.0
    %64 = vadd.xlane.f32.xlu0 %v63
    %v65 = vpop.xlane.xlu0 %64
    %v66 = vsel %vm35, %v29, 0.0
    %67 = vadd.xlane.f32.xlu0 %v66
    %v68 = vpop.xlane.xlu0 %67
    %v69 = vsel %vm35, %v30, 0.0
    %70 = vadd.xlane.f32.xlu0 %v69
    %v71 = vpop.xlane.xlu0 %70
    %v72 = vsel %vm35, %v31, 0.0
    %73 = vadd.xlane.f32.xlu0 %v72
    %v74 = vpop.xlane.xlu0 %73
    %v75 = vsel %vm35, %v32, 0.0
    %76 = vadd.xlane.f32.xlu0 %v75
    %v77 = vpop.xlane.xlu0 %76
    %v78 = vsel %vm35, %v33, 0.0
    %79 = vadd.xlane.f32.xlu0 %v78
    %v80 = vpop.xlane.xlu0 %79
    %v81 = vsel %vm35, %v34, 0.0
    %82 = vadd.xlane.f32.xlu0 %v81
    %v83 = vpop.xlane.xlu0 %82
    %v84 = vrcp.pop 32.0
    %v85 = vmul.f32 %v38, %v84
    %v86 = vmul.f32 %v41, %v84
    %v87 = vmul.f32 %v44, %v84
    %v88 = vmul.f32 %v47, %v84
    %v89 = vmul.f32 %v50, %v84
    %v90 = vmul.f32 %v53, %v84
    %v91 = vmul.f32 %v56, %v84
    %v92 = vmul.f32 %v59, %v84
    %v93 = vmul.f32 %v62, %v84
    %v94 = vmul.f32 %v65, %v84
    %v95 = vmul.f32 %v68, %v84
    %v96 = vmul.f32 %v71, %v84
    %v97 = vmul.f32 %v74, %v84
    %v98 = vmul.f32 %v77, %v84
    %v99 = vmul.f32 %v80, %v84
    %v100 = vmul.f32 %v83, %v84
    %v101 = vsub.f32 %v19, %v85
    %v102 = vsub.f32 %v20, %v86
    %v103 = vsub.f32 %v21, %v87
    %v104 = vsub.f32 %v22, %v88
    %v105 = vsub.f32 %v23, %v89
    %v106 = vsub.f32 %v24, %v90
    %v107 = vsub.f32 %v25, %v91
    %v108 = vsub.f32 %v26, %v92
    %v109 = vsub.f32 %v27, %v93
    %v110 = vsub.f32 %v28, %v94
    %v111 = vsub.f32 %v29, %v95
    %v112 = vsub.f32 %v30, %v96
    %v113 = vsub.f32 %v31, %v97
    %v114 = vsub.f32 %v32, %v98
    %v115 = vsub.f32 %v33, %v99
    %v116 = vsub.f32 %v34, %v100
    %v117 = vmul.f32 %v101, %v101
    %v118 = vmul.f32 %v102, %v102
    %v119 = vmul.f32 %v103, %v103
    %v120 = vmul.f32 %v104, %v104
    %v121 = vmul.f32 %v105, %v105
    %v122 = vmul.f32 %v106, %v106
    %v123 = vmul.f32 %v107, %v107
    %v124 = vmul.f32 %v108, %v108
    %v125 = vmul.f32 %v109, %v109
    %v126 = vmul.f32 %v110, %v110
    %v127 = vmul.f32 %v111, %v111
    %v128 = vmul.f32 %v112, %v112
    %v129 = vmul.f32 %v113, %v113
    %v130 = vmul.f32 %v114, %v114
    %v131 = vmul.f32 %v115, %v115
    %v132 = vmul.f32 %v116, %v116
    %v133 = vsel %vm35, %v117, 0.0
    %134 = vadd.xlane.f32.xlu0 %v133
    %v135 = vpop.xlane.xlu0 %134
    %v136 = vsel %vm35, %v118, 0.0
    %137 = vadd.xlane.f32.xlu0 %v136
    %v138 = vpop.xlane.xlu0 %137
    %v139 = vsel %vm35, %v119, 0.0
    %140 = vadd.xlane.f32.xlu0 %v139
    %v141 = vpop.xlane.xlu0 %140
    %v142 = vsel %vm35, %v120, 0.0
    %143 = vadd.xlane.f32.xlu0 %v142
    %v144 = vpop.xlane.xlu0 %143
    %v145 = vsel %vm35, %v121, 0.0
    %146 = vadd.xlane.f32.xlu0 %v145
    %v147 = vpop.xlane.xlu0 %146
    %v148 = vsel %vm35, %v122, 0.0
    %149 = vadd.xlane.f32.xlu0 %v148
    %v150 = vpop.xlane.xlu0 %149
    %v151 = vsel %vm35, %v123, 0.0
    %152 = vadd.xlane.f32.xlu0 %v151
    %v153 = vpop.xlane.xlu0 %152
    %v154 = vsel %vm35, %v124, 0.0
    %155 = vadd.xlane.f32.xlu0 %v154
    %v156 = vpop.xlane.xlu0 %155
    %v157 = vsel %vm35, %v125, 0.0
    %158 = vadd.xlane.f32.xlu0 %v157
    %v159 = vpop.xlane.xlu0 %158
    %v160 = vsel %vm35, %v126, 0.0
    %161 = vadd.xlane.f32.xlu0 %v160
    %v162 = vpop.xlane.xlu0 %161
    %v163 = vsel %vm35, %v127, 0.0
    %164 = vadd.xlane.f32.xlu0 %v163
    %v165 = vpop.xlane.xlu0 %164
    %v166 = vsel %vm35, %v128, 0.0
    %167 = vadd.xlane.f32.xlu0 %v166
    %v168 = vpop.xlane.xlu0 %167
    %v169 = vsel %vm35, %v129, 0.0
    %170 = vadd.xlane.f32.xlu0 %v169
    %v171 = vpop.xlane.xlu0 %170
    %v172 = vsel %vm35, %v130, 0.0
    %173 = vadd.xlane.f32.xlu0 %v172
    %v174 = vpop.xlane.xlu0 %173
    %v175 = vsel %vm35, %v131, 0.0
    %176 = vadd.xlane.f32.xlu0 %v175
    %v177 = vpop.xlane.xlu0 %176
    %v178 = vsel %vm35, %v132, 0.0
    %179 = vadd.xlane.f32.xlu0 %v178
    %v180 = vpop.xlane.xlu0 %179
    %v181 = vmul.f32 %v135, %v84
    %v182 = vmul.f32 %v138, %v84
    %v183 = vmul.f32 %v141, %v84
    %v184 = vmul.f32 %v144, %v84
    %v185 = vmul.f32 %v147, %v84
    %v186 = vmul.f32 %v150, %v84
    %v187 = vmul.f32 %v153, %v84
    %v188 = vmul.f32 %v156, %v84
    %v189 = vmul.f32 %v159, %v84
    %v190 = vmul.f32 %v162, %v84
    %v191 = vmul.f32 %v165, %v84
    %v192 = vmul.f32 %v168, %v84
    %v193 = vmul.f32 %v171, %v84
    %v194 = vmul.f32 %v174, %v84
    %v195 = vmul.f32 %v177, %v84
    %v196 = vmul.f32 %v180, %v84
    %v197 = vadd.f32 %v181, 1e-05
    %v198 = vadd.f32 %v182, 1e-05
    %v199 = vadd.f32 %v183, 1e-05
    %v200 = vadd.f32 %v184, 1e-05
    %v201 = vadd.f32 %v185, 1e-05
    %v202 = vadd.f32 %v186, 1e-05
    %v203 = vadd.f32 %v187, 1e-05
    %v204 = vadd.f32 %v188, 1e-05
    %v205 = vadd.f32 %v189, 1e-05
    %v206 = vadd.f32 %v190, 1e-05
    %v207 = vadd.f32 %v191, 1e-05
    %v208 = vadd.f32 %v192, 1e-05
    %v209 = vadd.f32 %v193, 1e-05
    %v210 = vadd.f32 %v194, 1e-05
    %v211 = vadd.f32 %v195, 1e-05
    %v212 = vadd.f32 %v196, 1e-05
    %v213 = vrsqrt.pop %v197
    %v214 = vrsqrt.pop %v198
    %v215 = vrsqrt.pop %v199
    %v216 = vrsqrt.pop %v200
    %v217 = vrsqrt.pop %v201
    %v218 = vrsqrt.pop %v202
    %v219 = vrsqrt.pop %v203
    %v220 = vrsqrt.pop %v204
    %v221 = vrsqrt.pop %v205
    %v222 = vrsqrt.pop %v206
    %v223 = vrsqrt.pop %v207
    %v224 = vrsqrt.pop %v208
    %v225 = vrsqrt.pop %v209
    %v226 = vrsqrt.pop %v210
    %v227 = vrsqrt.pop %v211
    %v228 = vrsqrt.pop %v212
    %v229 = vmul.f32 %v101, %v213
    %v230 = vmul.f32 %v102, %v214
    %v231 = vmul.f32 %v103, %v215
    %v232 = vmul.f32 %v104, %v216
    %v233 = vmul.f32 %v105, %v217
    %v234 = vmul.f32 %v106, %v218
    %v235 = vmul.f32 %v107, %v219
    %v236 = vmul.f32 %v108, %v220
    %v237 = vmul.f32 %v109, %v221
    %v238 = vmul.f32 %v110, %v222
    %v239 = vmul.f32 %v111, %v223
    %v240 = vmul.f32 %v112, %v224
    %v241 = vmul.f32 %v113, %v225
    %v242 = vmul.f32 %v114, %v226
    %v243 = vmul.f32 %v115, %v227
    %v244 = vmul.f32 %v116, %v228
    %v245 = vpack.c.bf16 %v230, %v229
    %v246 = vpack.c.bf16 %v232, %v231
    %v247 = vpack.c.bf16 %v234, %v233
    %v248 = vpack.c.bf16 %v236, %v235
    %v249 = vpack.c.bf16 %v238, %v237
    %v250 = vpack.c.bf16 %v240, %v239
    %v251 = vpack.c.bf16 %v242, %v241
    %v252 = vpack.c.bf16 %v244, %v243
    %253 = vst.msk [vmem:[#allocation2] sm:$0xff] %vm35, %v245
    %254 = vst.msk [vmem:[#allocation2 + $0x8] sm:$0xff] %vm35, %v246
    %255 = vst.msk [vmem:[#allocation2 + $0x10] sm:$0xff] %vm35, %v247
    %256 = vst.msk [vmem:[#allocation2 + $0x18] sm:$0xff] %vm35, %v248
    %257 = vst.msk [vmem:[#allocation2 + $0x20] sm:$0xff] %vm35, %v249
    %258 = vst.msk [vmem:[#allocation2 + $0x28] sm:$0xff] %vm35, %v250
    %259 = vst.msk [vmem:[#allocation2 + $0x30] sm:$0xff] %vm35, %v251
    %260 = vst.msk [vmem:[#allocation2 + $0x38] sm:$0xff] %vm35, %v252
  $region17: #{tpu_custom_call.1} parent=0 // pred_fallthru
    _
  %v261 = vld [vmem:[#allocation2] sm:$0xff]
  %v262 = vld [vmem:[#allocation2 + $0x8] sm:$0xff]
  %v263 = vld [vmem:[#allocation2 + $0x10] sm:$0xff]
  %v264 = vld [vmem:[#allocation2 + $0x18] sm:$0xff]
  %v265 = vld [vmem:[#allocation2 + $0x20] sm:$0xff]
  %v266 = vld [vmem:[#allocation2 + $0x28] sm:$0xff]
  %v267 = vld [vmem:[#allocation2 + $0x30] sm:$0xff]
  %v268 = vld [vmem:[#allocation2 + $0x38] sm:$0xff]
  %v269 = vld [vmem:[%s1] sm:$0xf]
  %v270 = vld [vmem:[%s1 + $0x4] sm:$0xf]
  %v271 = vld [vmem:[%s1 + $0x8] sm:$0xf]
  %v272 = vld [vmem:[%s1 + $0xc] sm:$0xf]
  %v273 = vld [vmem:[%s2] sm:$0x1]
  %v275 = vlaneseq
  %v276 = vshrl.u32 %v275, 7
  %v277 = vsub.s32 0, %v276
  %v278 = vrot.slane %v273, %v277
  %v284 = vunpack.c.l.b16 %v269
  %v285 = vunpack.c.l.b16 %v270
  %v286 = vunpack.c.l.b16 %v271
  %v287 = vunpack.c.l.b16 %v272
  %v288 = vpack.c.b16 %v285, %v284
  %v289 = vpack.c.b16 %v287, %v286
  %vm292 = vcmask 261120
  %v294 = vsel %vm292, %v261, 0
  %v297 = vsel %vm292, %v262, 0
  %v300 = vsel %vm292, %v263, 0
  %v303 = vsel %vm292, %v264, 0
  %v306 = vsel %vm292, %v265, 0
  %v309 = vsel %vm292, %v266, 0
  %v312 = vsel %vm292, %v267, 0
  %v315 = vsel %vm292, %v268, 0
  %317 = vmatprep.subr.bf16.mxu0 0
  %318 = vmatpush1.bf16.msra.mxu0 %v288
  %319 = vmatprep.subr.bf16.mxu0 0
  %320 = vmatpush1.bf16.msra.mxu0 %v289
  %321 = vmatprep.subr.bf16.mxu0 0
  %322 = vmatpush1.bf16.msra.mxu0 0
  %323 = vmatprep.subr.bf16.mxu0 0
  %324 = vmatpush1.bf16.msra.mxu0 0
  %325 = vmatprep.subr.bf16.mxu0 0
  %326 = vmatpush1.bf16.msra.mxu0 0
  %327 = vmatprep.subr.bf16.mxu0 0
  %328 = vmatpush1.bf16.msra.mxu0 0
  %329 = vmatprep.subr.bf16.mxu0 0
  %330 = vmatpush1.bf16.msra.mxu0 0
  %331 = vmatprep.subr.bf16.mxu0 0
  %332 = vmatpush1.bf16.msra.mxu0 0
  %333 = vmatprep.subr.bf16.mxu0 0
  %334 = vmatpush1.bf16.msra.mxu0 0
  %335 = vmatprep.subr.bf16.mxu0 0
  %336 = vmatpush1.bf16.msra.mxu0 0
  %337 = vmatprep.subr.bf16.mxu0 0
  %338 = vmatpush1.bf16.msra.mxu0 0
  %339 = vmatprep.subr.bf16.mxu0 0
  %340 = vmatpush1.bf16.msra.mxu0 0
  %341 = vmatprep.subr.bf16.mxu0 0
  %342 = vmatpush1.bf16.msra.mxu0 0
  %343 = vmatprep.subr.bf16.mxu0 0
  %344 = vmatpush1.bf16.msra.mxu0 0
  %345 = vmatprep.subr.bf16.mxu0 0
  %346 = vmatpush1.bf16.msra.mxu0 0
  %347 = vmatprep.subr.bf16.mxu0 0
  %348 = vmatpush1.bf16.msra.mxu0 0
  %349 = vmatprep.mubr.bf16.mxu0 0
  %350 = vmatmul.mubr.bf16.gmra.mrb[0].mxu0 %v294
  %v351 = vpop.f32.mrb[0].mxu0
  %v352 = vadd.f32 %v278, %v351
  %v353 = vpop.f32.mrb[0].mxu0
  %v354 = vpop.f32.mrb[0].mxu0
  %v355 = vadd.f32 %v278, %v354
  %v356 = vpop.f32.mrb[0].mxu0
  %357 = vmatprep.mubr.bf16.mxu0 0
  %358 = vmatmul.mubr.bf16.gmra.mrb[0].mxu0 %v297
  %v359 = vpop.f32.mrb[0].mxu0
  %v360 = vadd.f32 %v278, %v359
  %v361 = vpop.f32.mrb[0].mxu0
  %v362 = vpop.f32.mrb[0].mxu0
  %v363 = vadd.f32 %v278, %v362
  %v364 = vpop.f32.mrb[0].mxu0
  %365 = vmatprep.mubr.bf16.mxu0 0
  %366 = vmatmul.mubr.bf16.gmra.mrb[0].mxu0 %v300
  %v367 = vpop.f32.mrb[0].mxu0
  %v368 = vadd.f32 %v278, %v367
  %v369 = vpop.f32.mrb[0].mxu0
  %v370 = vpop.f32.mrb[0].mxu0
  %v371 = vadd.f32 %v278, %v370
  %v372 = vpop.f32.mrb[0].mxu0
  %373 = vmatprep.mubr.bf16.mxu0 0
  %374 = vmatmul.mubr.bf16.gmra.mrb[0].mxu0 %v303
  %v375 = vpop.f32.mrb[0].mxu0
  %v376 = vadd.f32 %v278, %v375
  %v377 = vpop.f32.mrb[0].mxu0
  %v378 = vpop.f32.mrb[0].mxu0
  %v379 = vadd.f32 %v278, %v378
  %v380 = vpop.f32.mrb[0].mxu0
  %381 = vmatprep.mubr.bf16.mxu0 0
  %382 = vmatmul.mubr.bf16.gmra.mrb[0].mxu0 %v306
  %v383 = vpop.f32.mrb[0].mxu0
  %v384 = vadd.f32 %v278, %v383
  %v385 = vpop.f32.mrb[0].mxu0
  %v386 = vpop.f32.mrb[0].mxu0
  %v387 = vadd.f32 %v278, %v386
  %v388 = vpop.f32.mrb[0].mxu0
  %389 = vmatprep.mubr.bf16.mxu0 0
  %390 = vmatmul.mubr.bf16.gmra.mrb[0].mxu0 %v309
  %v391 = vpop.f32.mrb[0].mxu0
  %v392 = vadd.f32 %v278, %v391
  %v393 = vpop.f32.mrb[0].mxu0
  %v394 = vpop.f32.mrb[0].mxu0
  %v395 = vadd.f32 %v278, %v394
  %v396 = vpop.f32.mrb[0].mxu0
  %397 = vmatprep.mubr.bf16.mxu0 0
  %398 = vmatmul.mubr.bf16.gmra.mrb[0].mxu0 %v312
  %v399 = vpop.f32.mrb[0].mxu0
  %v400 = vadd.f32 %v278, %v399
  %v401 = vpop.f32.mrb[0].mxu0
  %v402 = vpop.f32.mrb[0].mxu0
  %v403 = vadd.f32 %v278, %v402
  %v404 = vpop.f32.mrb[0].mxu0
  %405 = vmatprep.mubr.bf16.mxu0 0
  %406 = vmatmul.mubr.bf16.gmra.mrb[0].mxu0 %v315
  %v407 = vpop.f32.mrb[0].mxu0
  %v408 = vadd.f32 %v278, %v407
  %v409 = vpop.f32.mrb[0].mxu0
  %v410 = vpop.f32.mrb[0].mxu0
  %v411 = vadd.f32 %v278, %v410
  %v412 = vpop.f32.mrb[0].mxu0
  %413 = vdwg.mxu0
  %vm414 = vcmask 523264
  %415 = vst.msk [vmem:[%s3] sm:$0xff] %vm414, %v352
  %416 = vst.msk [vmem:[%s3 + $0x8] sm:$0xff] %vm414, %v355
  %417 = vst.msk [vmem:[%s3 + $0x10] sm:$0xff] %vm414, %v360
  %418 = vst.msk [vmem:[%s3 + $0x18] sm:$0xff] %vm414, %v363
  %419 = vst.msk [vmem:[%s3 + $0x20] sm:$0xff] %vm414, %v368
  %420 = vst.msk [vmem:[%s3 + $0x28] sm:$0xff] %vm414, %v371
  %421 = vst.msk [vmem:[%s3 + $0x30] sm:$0xff] %vm414, %v376
  %422 = vst.msk [vmem:[%s3 + $0x38] sm:$0xff] %vm414, %v379
  %423 = vst.msk [vmem:[%s3 + $0x40] sm:$0xff] %vm414, %v384
  %424 = vst.msk [vmem:[%s3 + $0x48] sm:$0xff] %vm414, %v387
  %425 = vst.msk [vmem:[%s3 + $0x50] sm:$0xff] %vm414, %v392
  %426 = vst.msk [vmem:[%s3 + $0x58] sm:$0xff] %vm414, %v395
  %427 = vst.msk [vmem:[%s3 + $0x60] sm:$0xff] %vm414, %v400
  %428 = vst.msk [vmem:[%s3 + $0x68] sm:$0xff] %vm414, %v403
  %429 = vst.msk [vmem:[%s3 + $0x70] sm:$0xff] %vm414, %v408
  %430 = vst.msk [vmem:[%s3 + $0x78] sm:$0xff] %vm414, %v411
  // Predicated region
  $region18: #{tpu_custom_call.1} parent=0 // pred_check
    _
  $region19: #{tpu_custom_call.1} parent=0 // pred_check_branch
    %432 = sbr.rel (0) target = $region21
  $region20: #{tpu_custom_call.1} parent=0 // pred_region
    _
  $region21: #{tpu_custom_call.1} parent=0 // pred_fallthru
    _
  // Predicated region
  $region22: #{tpu_custom_call.1} parent=0 // pred_check
    _
  $region23: #{tpu_custom_call.1} parent=0 // pred_check_branch
    %434 = sbr.rel (0) target = $region25
  $region24: #{tpu_custom_call.1} parent=0 // pred_region
    _
  $region25: #{tpu_custom_call.1} parent=0 // pred_fallthru
    _

</llo_original>
